<compile_context>
chip_gen: v7x
topology: tpu7x:2x2x1
jax: 0.10.0
libtpu: 0.0.40
codegen_flags: <defaults>
</compile_context>

<pallas_src>
import functools

import jax
import jax.numpy as jnp
from jax.experimental import pallas as pl
from jax.experimental.pallas import tpu as pltpu

EPS = 1e-5  # args.eps


def _silu(v):
    return v * jax.nn.sigmoid(v)


def _softplus(v):
    # Numerically stable softplus (log1p(exp(v)) overflows for large v).
    return jnp.maximum(v, 0.0) + jnp.log1p(jnp.exp(-jnp.abs(v)))


def mamba_residual_kernel(x_ref, wn_ref, wixz_ref, wc_ref, bc_ref, wssm_ref,
                          bdt_ref, a_ref, d_ref, wout_ref, out_ref,
                          *, L, DIp, N, K):
    f32 = jnp.float32
    x = x_ref[...]                                              # (L, E) f32

    # ---- RMSNorm (ttnn.rms_norm with weight, epsilon) ----
    ms = jnp.mean(x * x, axis=-1, keepdims=True)
    xn = x * jax.lax.rsqrt(ms + EPS) * wn_ref[...]

    # ---- fused in_proj [x-branch | gate(z)-branch]; bf16 MXU, f32 accum ----
    xz = jnp.dot(xn.astype(jnp.bfloat16), wixz_ref[...],
                 preferred_element_type=f32)                    # (L, 2*DIp)
    xb = xz[:, :DIp]                                            # lane-aligned view
    z = xz[:, DIp:]                                             # lane-aligned view

    # ---- causal depthwise conv1d (K taps) + bias, then SiLU ----
    # Sublane rolls on the XLU + row mask instead of concat/misaligned slices.
    wc = wc_ref[...]                                            # (K, DIp)
    row = jax.lax.broadcasted_iota(jnp.int32, (L, DIp), 0)
    conv = jnp.broadcast_to(bc_ref[...], (L, DIp))
    conv = conv + xb * wc[K - 1:K, :]                           # current-sample tap
    for k in range(K - 1):
        s = K - 1 - k                                           # shift for tap k
        shifted = jnp.where(row >= s, pltpu.roll(xb, shift=s, axis=0), 0.0)
        conv = conv + shifted * wc[k:k + 1, :]
    xs = _silu(conv)                                            # (L, DIp) f32

    # ---- fused SSM projections [dt (wx_dt@wdt folded) | B | C] ----
    proj = jnp.dot(xs.astype(jnp.bfloat16), wssm_ref[...],
                   preferred_element_type=f32)                  # (L, DIp + 2N)
    dt = _softplus(proj[:, :DIp] + bdt_ref[...])                # (L, DIp)
    Bm = proj[:, DIp:DIp + N]                                   # (L, N) tiny slabs
    Cm = proj[:, DIp + N:]                                      # (L, N)

    # ---- transcendentals / input term hoisted off the serial scan path ----
    # (N, DIp) inner layout: DIp dense on the 128-lane axis, N on sublanes.
    A = a_ref[...]                                              # (N, DIp) = -exp(A_log)
    dA = jnp.exp(dt[:, None, :] * A[None, :, :])                # (L, N, DIp)
    dBx = (dt * xs)[:, None, :] * Bm[:, :, None]                # (L, N, DIp)
    CmB = jnp.broadcast_to(Cm[:, :, None], (L, N, DIp))         # hoisted broadcast

    # ---- selective scan: one lane-dense FMA per step on the serial chain.
    # h stays in vregs; per-step C-contraction accumulates y rows in vregs
    # (no history scratch, no VMEM round trip).
    h = jnp.zeros((N, DIp), f32)
    rows = []
    for t in range(L):        # L small & static: fully unrolled (see TODO above)
        h = dA[t] * h + dBx[t]
        rows.append(jnp.sum(h * CmB[t], axis=0, keepdims=True))  # (1, DIp)
    yv = jnp.concatenate(rows, axis=0)                          # (L, DIp)

    # ---- skip (D), SiLU(z) gate, out_proj (bf16 MXU), residual add ----
    y = (yv + xs * d_ref[...]) * _silu(z)
    out_ref[...] = x + jnp.dot(y.astype(jnp.bfloat16), wout_ref[...],
                               preferred_element_type=f32)


def prepare_params(params):
    """One-time weight refactoring (exact linear algebra + zero padding).

    - in_proj x/z weights fused; SSM dt/B/C weights fused with wx_dt@wdt folded
      (no nonlinearity between them).
    - DI zero-padded to DIp = round_up(DI, 128) so every column-group slice in
      the kernel is lane-aligned; padded lanes stay exactly zero through the
      whole forward pass (A padded with -1 keeps exp(dt*A) bounded).
    - MXU operand weights cast to bf16 (accumulation stays f32 in-kernel).
    """
    E, DI = params["win_x"].shape
    N = params["wx_B"].shape[1]
    K = params["wconv"].shape[0]
    DIp = ((DI + 127) // 128) * 128
    pad = DIp - DI

    def padc(w):  # pad last dim DI -> DIp with zeros
        return jnp.pad(w, ((0, 0), (0, pad)))

    win_xz = jnp.concatenate([padc(params["win_x"]), padc(params["win_z"])],
                             axis=1).astype(jnp.bfloat16)               # (E, 2*DIp)
    wconv = padc(params["wconv"])                                       # (K, DIp)
    bconv = padc(params["bconv"])                                       # (1, DIp)

    wdt_full = params["wx_dt"] @ params["wdt"]                          # (DI, DI)
    wdt_full = jnp.pad(wdt_full, ((0, pad), (0, pad)))                  # (DIp, DIp)
    wx_B = jnp.pad(params["wx_B"], ((0, pad), (0, 0)))                  # (DIp, N)
    wx_C = jnp.pad(params["wx_C"], ((0, pad), (0, 0)))                  # (DIp, N)
    wssm = jnp.concatenate([wdt_full, wx_B, wx_C],
                           axis=1).astype(jnp.bfloat16)                 # (DIp, DIp+2N)

    bdt = padc(params["bdt"])                                           # (1, DIp)
    A = -jnp.exp(params["alog"])                                        # (DI, N)
    A_t = jnp.pad(A.T, ((0, 0), (0, pad)), constant_values=-1.0)        # (N, DIp)
    d_row = padc(params["D"].reshape(1, -1))                            # (1, DIp)
    wout = jnp.pad(params["wout"], ((0, pad), (0, 0))).astype(jnp.bfloat16)  # (DIp, E)

    return dict(wnorm=params["wnorm"], win_xz=win_xz, wconv=wconv, bconv=bconv,
                wssm=wssm, bdt=bdt, A=A_t, d=d_row, wout=wout,
                dims=dict(E=E, DI=DI, DIp=DIp, N=N, K=K))


def tt_residual_block(x, prep):
    b0, b1, L, E = x.shape
    d = prep["dims"]
    DIp, N, K = d["DIp"], d["N"], d["K"]
    ordered = (prep["wnorm"], prep["win_xz"], prep["wconv"], prep["bconv"],
               prep["wssm"], prep["bdt"], prep["A"], prep["d"], prep["wout"])

    def fspec(a):
        nd = a.ndim
        return pl.BlockSpec(a.shape, lambda i, nd=nd: (0,) * nd)

    x2 = x.reshape(L, E).astype(jnp.float32)
    kernel = functools.partial(mamba_residual_kernel, L=L, DIp=DIp, N=N, K=K)
    out2 = pl.pallas_call(
        kernel,
        out_shape=jax.ShapeDtypeStruct((L, E), jnp.float32),
        grid=(1,),
        in_specs=[fspec(x2)] + [fspec(a) for a in ordered],
        out_specs=pl.BlockSpec((L, E), lambda i: (0, 0)),
        compiler_params=pltpu.CompilerParams(dimension_semantics=("arbitrary",)),
    )(x2, *ordered)
    return out2.reshape(b0, b1, L, E)


# ----------------------------- references -----------------------------------

def reference_f32(x4, p):
    """Module-faithful f32 reference (unfused, unpadded weights)."""
    b0, b1, L, E = x4.shape
    K = p["wconv"].shape[0]
    DI = p["win_x"].shape[1]
    x = x4.reshape(L, E).astype(jnp.float32)
    ms = jnp.mean(x * x, axis=-1, keepdims=True)
    xn = x * jax.lax.rsqrt(ms + EPS) * p["wnorm"]
    xb = xn @ p["win_x"]
    z = xn @ p["win_z"]
    xb_pad = jnp.pad(xb, ((K - 1, 0), (0, 0)))
    conv = jnp.broadcast_to(p["bconv"], xb.shape)
    for k in range(K):
        conv = conv + xb_pad[k:k + L] * p["wconv"][k:k + 1]
    xs = _silu(conv)
    dt = _softplus((xs @ p["wx_dt"]) @ p["wdt"] + p["bdt"])
    Bm = xs @ p["wx_B"]
    Cm = xs @ p["wx_C"]
    A = -jnp.exp(p["alog"])                                     # (DI, N)
    h = jnp.zeros((DI, Bm.shape[1]), jnp.float32)
    ys = []
    for t in range(L):
        h = jnp.exp(dt[t][:, None] * A) * h + (dt[t] * xs[t])[:, None] * Bm[t][None, :]
        ys.append(jnp.sum(h * Cm[t][None, :], axis=1) + p["D"][:, 0] * xs[t])
    y = jnp.stack(ys) * _silu(z)
    return (x + y @ p["wout"]).reshape(x4.shape)


def reference_matched(x4, prep):
    """Plain-JAX replica of the kernel's exact numerics (padded bf16 matmuls)."""
    d = prep["dims"]
    L, E = x4.shape[2], d["E"]
    DIp, N, K = d["DIp"], d["N"], d["K"]
    x = x4.reshape(L, E).astype(jnp.float32)
    ms = jnp.mean(x * x, axis=-1, keepdims=True)
    xn = x * jax.lax.rsqrt(ms + EPS) * prep["wnorm"]
    xz = jnp.dot(xn.astype(jnp.bfloat16), prep["win_xz"],
                 preferred_element_type=jnp.float32)
    xb, z = xz[:, :DIp], xz[:, DIp:]
    xb_pad = jnp.pad(xb, ((K - 1, 0), (0, 0)))
    conv = jnp.broadcast_to(prep["bconv"], (L, DIp))
    for k in range(K):
        conv = conv + xb_pad[k:k + L] * prep["wconv"][k:k + 1]
    xs = _silu(conv)
    proj = jnp.dot(xs.astype(jnp.bfloat16), prep["wssm"],
                   preferred_element_type=jnp.float32)
    dt = _softplus(proj[:, :DIp] + prep["bdt"])
    Bm, Cm = proj[:, DIp:DIp + N], proj[:, DIp + N:]
    dA = jnp.exp(dt[:, None, :] * prep["A"][None, :, :])
    dBx = (dt * xs)[:, None, :] * Bm[:, :, None]
    h = jnp.zeros((N, DIp), jnp.float32)
    rows = []
    for t in range(L):
        h = dA[t] * h + dBx[t]
        rows.append(jnp.sum(h * Cm[t][:, None], axis=0, keepdims=True))
    y = (jnp.concatenate(rows, axis=0) + xs * prep["d"]) * _silu(z)
    out = x + jnp.dot(y.astype(jnp.bfloat16), prep["wout"],
                      preferred_element_type=jnp.float32)
    return out.reshape(x4.shape)


# ------------------------------- demo setup ----------------------------------

def init_params(key, E, DI, N, K, R):
    ks = jax.random.split(key, 10)

    def w(k, shape, fan_in):
        return (jax.random.normal(k, shape, jnp.float32) /
                jnp.sqrt(jnp.float32(fan_in))).astype(jnp.float32)

    return dict(
        wnorm=(1.0 + 0.1 * jax.random.normal(ks[0], (1, E), jnp.float32)),
        win_x=w(ks[1], (E, DI), E),
        win_z=w(ks[2], (E, DI), E),
        wconv=w(ks[3], (K, DI), K),
        bconv=0.1 * jax.random.normal(ks[4], (1, DI), jnp.float32),
        wx_dt=w(ks[5], (DI, R), DI),
        wx_B=w(ks[6], (DI, N), DI),
        wx_C=w(ks[7], (DI, N), DI),
        wdt=w(ks[8], (R, DI), R),
        bdt=0.1 * jax.random.normal(ks[9], (1, DI), jnp.float32),
        alog=jnp.log(jnp.broadcast_to(
            jnp.arange(1, N + 1, dtype=jnp.float32)[None, :], (DI, N))).astype(jnp.float32),
        D=jnp.ones((DI, 1), jnp.float32),
        wout=w(jax.random.fold_in(key, 99), (DI, E), DI),
    )


if __name__ == "__main__":
    # Small, shape-consistent demo config: d_model=32, seq=8 (rank-4 input
    # (1, 1, 8, 32)), d_inner=2*d_model=64, d_state=16, d_conv=4, dt_rank=2.
    E, L = 32, 8
    DI, N, K = 2 * E, 16, 4
    R = max(1, E // 16)

    key = jax.random.PRNGKey(0)
    kx, kp = jax.random.split(key)
    x = jax.random.normal(kx, (1, 1, L, E), jnp.float32)
    params = init_params(kp, E, DI, N, K, R)
    prep = prepare_params(params)           # one-time weight fuse/pad/bf16 cast

    out = jax.block_until_ready(tt_residual_block(x, prep))
    assert out.shape == x.shape

    # Tight check: same numerics (padded bf16 matmuls, f32 accum) in plain JAX.
    ref_m = reference_matched(x, prep)
    assert jnp.allclose(out, ref_m, rtol=2e-3, atol=2e-3), \
        float(jnp.max(jnp.abs(out - ref_m)))

    # Semantic guard: module-faithful f32 reference (bf16 MXU inputs in the
    # kernel widen the tolerance here).
    ref_f = reference_f32(x, params)
    assert jnp.allclose(out, ref_f, rtol=1e-1, atol=1e-1), \
        float(jnp.max(jnp.abs(out - ref_f)))

    print("KERNEL_OK")
</pallas_src>

<mosaic_0001>
module attributes {stable_mosaic.version = 11 : i64} {
  func.func @mamba_residual_kernel(%arg0: i32, %arg1: memref<8x32xf32, #tpu.memory_space<vmem>>, %arg2: memref<1x32xf32, #tpu.memory_space<vmem>>, %arg3: memref<32x256xbf16, #tpu.memory_space<vmem>>, %arg4: memref<4x128xf32, #tpu.memory_space<vmem>>, %arg5: memref<1x128xf32, #tpu.memory_space<vmem>>, %arg6: memref<128x160xbf16, #tpu.memory_space<vmem>>, %arg7: memref<1x128xf32, #tpu.memory_space<vmem>>, %arg8: memref<16x128xf32, #tpu.memory_space<vmem>>, %arg9: memref<1x128xf32, #tpu.memory_space<vmem>>, %arg10: memref<128x32xbf16, #tpu.memory_space<vmem>>, %arg11: memref<8x32xf32, #tpu.memory_space<vmem>>) attributes {dimension_semantics = [#tpu.dimension_semantics<arbitrary>], iteration_bounds = array<i64: 1>, scalar_prefetch = 0 : i64, scratch_operands = 0 : i64, tpu.core_type = #tpu.core_type<tc>, window_params = [{pipeline_mode = #tpu.pipeline_mode<synchronous>, transform_indices = @transform_0, window_bounds = array<i64: 8, 32>}, {pipeline_mode = #tpu.pipeline_mode<synchronous>, transform_indices = @transform_1, window_bounds = array<i64: 1, 32>}, {pipeline_mode = #tpu.pipeline_mode<synchronous>, transform_indices = @transform_2, window_bounds = array<i64: 32, 256>}, {pipeline_mode = #tpu.pipeline_mode<synchronous>, transform_indices = @transform_3, window_bounds = array<i64: 4, 128>}, {pipeline_mode = #tpu.pipeline_mode<synchronous>, transform_indices = @transform_4, window_bounds = array<i64: 1, 128>}, {pipeline_mode = #tpu.pipeline_mode<synchronous>, transform_indices = @transform_5, window_bounds = array<i64: 128, 160>}, {pipeline_mode = #tpu.pipeline_mode<synchronous>, transform_indices = @transform_6, window_bounds = array<i64: 1, 128>}, {pipeline_mode = #tpu.pipeline_mode<synchronous>, transform_indices = @transform_7, window_bounds = array<i64: 16, 128>}, {pipeline_mode = #tpu.pipeline_mode<synchronous>, transform_indices = @transform_8, window_bounds = array<i64: 1, 128>}, {pipeline_mode = #tpu.pipeline_mode<synchronous>, transform_indices = @transform_9, window_bounds = array<i64: 128, 32>}, {pipeline_mode = #tpu.pipeline_mode<synchronous>, transform_indices = @transform_10, window_bounds = array<i64: 8, 32>}]} {
    %c0 = arith.constant 0 : index
    %c0_0 = arith.constant 0 : index
    %0 = vector.load %arg1[%c0, %c0_0] : memref<8x32xf32, #tpu.memory_space<vmem>>, vector<8x32xf32>
    %1 = arith.mulf %0, %0 : vector<8x32xf32>
    %cst = arith.constant dense<0.000000e+00> : vector<8xf32>
    %2 = vector.multi_reduction <add>, %1, %cst [1] : vector<8x32xf32> to vector<8xf32>
    %3 = vector.shape_cast %2 : vector<8xf32> to vector<8x1xf32>
    %cst_1 = arith.constant 3.200000e+01 : f32
    %4 = vector.broadcast %cst_1 : f32 to vector<8x1xf32>
    %5 = arith.divf %3, %4 : vector<8x1xf32>
    %cst_2 = arith.constant 9.99999974E-6 : f32
    %6 = vector.broadcast %cst_2 : f32 to vector<8x1xf32>
    %7 = arith.addf %5, %6 : vector<8x1xf32>
    %8 = math.rsqrt %7 : vector<8x1xf32>
    %9 = vector.broadcast %8 : vector<8x1xf32> to vector<8x32xf32>
    %10 = arith.mulf %0, %9 : vector<8x32xf32>
    %c0_3 = arith.constant 0 : index
    %c0_4 = arith.constant 0 : index
    %11 = vector.load %arg2[%c0_3, %c0_4] : memref<1x32xf32, #tpu.memory_space<vmem>>, vector<1x32xf32>
    %12 = vector.broadcast %11 : vector<1x32xf32> to vector<8x32xf32>
    %13 = arith.mulf %10, %12 : vector<8x32xf32>
    %14 = arith.truncf %13 : vector<8x32xf32> to vector<8x32xbf16>
    %c0_5 = arith.constant 0 : index
    %c0_6 = arith.constant 0 : index
    %15 = vector.load %arg3[%c0_5, %c0_6] : memref<32x256xbf16, #tpu.memory_space<vmem>>, vector<32x256xbf16>
    %cst_7 = arith.constant dense<0.000000e+00> : vector<8x256xf32>
    %16 = tpu.matmul %14, %15, %cst_7 {dimension_numbers = #tpu.dot_dimension_numbers<[1], [0], [0], [1], [0, 0, 1, 1], [], []>} : vector<8x32xbf16>, vector<32x256xbf16>, vector<8x256xf32> -> vector<8x256xf32>
    %17 = vector.extract_strided_slice %16 {offsets = [0, 0], sizes = [8, 128], strides = [1, 1]} : vector<8x256xf32> to vector<8x128xf32>
    %18 = vector.extract_strided_slice %16 {offsets = [0, 128], sizes = [8, 128], strides = [1, 1]} : vector<8x256xf32> to vector<8x128xf32>
    %c0_8 = arith.constant 0 : index
    %c0_9 = arith.constant 0 : index
    %19 = vector.load %arg4[%c0_8, %c0_9] : memref<4x128xf32, #tpu.memory_space<vmem>>, vector<4x128xf32>
    %20 = tpu.iota {dimensions = array<i32: 0>} : vector<8x128xi32>
    %c0_10 = arith.constant 0 : index
    %c0_11 = arith.constant 0 : index
    %21 = vector.load %arg5[%c0_10, %c0_11] : memref<1x128xf32, #tpu.memory_space<vmem>>, vector<1x128xf32>
    %22 = vector.shape_cast %21 : vector<1x128xf32> to vector<1x128xf32>
    %23 = vector.broadcast %22 : vector<1x128xf32> to vector<8x128xf32>
    %24 = vector.extract_strided_slice %19 {offsets = [3, 0], sizes = [1, 128], strides = [1, 1]} : vector<4x128xf32> to vector<1x128xf32>
    %25 = vector.broadcast %24 : vector<1x128xf32> to vector<8x128xf32>
    %26 = arith.mulf %17, %25 : vector<8x128xf32>
    %27 = arith.addf %23, %26 : vector<8x128xf32>
    %c3_i32 = arith.constant 3 : i32
    %28 = vector.broadcast %c3_i32 : i32 to vector<8x128xi32>
    %29 = arith.cmpi sge, %20, %28 : vector<8x128xi32>
    %c3_i32_12 = arith.constant 3 : i32
    %30 = tpu.dynamic_rotate %17 by %c3_i32_12 dim 0 : vector<8x128xf32>, i32 -> vector<8x128xf32>
    %cst_13 = arith.constant 0.000000e+00 : f32
    %31 = vector.broadcast %cst_13 : f32 to vector<8x128xf32>
    %32 = arith.select %29, %30, %31 : vector<8x128xi1>, vector<8x128xf32>
    %33 = vector.extract_strided_slice %19 {offsets = [0, 0], sizes = [1, 128], strides = [1, 1]} : vector<4x128xf32> to vector<1x128xf32>
    %34 = vector.broadcast %33 : vector<1x128xf32> to vector<8x128xf32>
    %35 = arith.mulf %32, %34 : vector<8x128xf32>
    %36 = arith.addf %27, %35 : vector<8x128xf32>
    %c2_i32 = arith.constant 2 : i32
    %37 = vector.broadcast %c2_i32 : i32 to vector<8x128xi32>
    %38 = arith.cmpi sge, %20, %37 : vector<8x128xi32>
    %c2_i32_14 = arith.constant 2 : i32
    %39 = tpu.dynamic_rotate %17 by %c2_i32_14 dim 0 : vector<8x128xf32>, i32 -> vector<8x128xf32>
    %cst_15 = arith.constant 0.000000e+00 : f32
    %40 = vector.broadcast %cst_15 : f32 to vector<8x128xf32>
    %41 = arith.select %38, %39, %40 : vector<8x128xi1>, vector<8x128xf32>
    %42 = vector.extract_strided_slice %19 {offsets = [1, 0], sizes = [1, 128], strides = [1, 1]} : vector<4x128xf32> to vector<1x128xf32>
    %43 = vector.broadcast %42 : vector<1x128xf32> to vector<8x128xf32>
    %44 = arith.mulf %41, %43 : vector<8x128xf32>
    %45 = arith.addf %36, %44 : vector<8x128xf32>
    %c1_i32 = arith.constant 1 : i32
    %46 = vector.broadcast %c1_i32 : i32 to vector<8x128xi32>
    %47 = arith.cmpi sge, %20, %46 : vector<8x128xi32>
    %c1_i32_16 = arith.constant 1 : i32
    %48 = tpu.dynamic_rotate %17 by %c1_i32_16 dim 0 : vector<8x128xf32>, i32 -> vector<8x128xf32>
    %cst_17 = arith.constant 0.000000e+00 : f32
    %49 = vector.broadcast %cst_17 : f32 to vector<8x128xf32>
    %50 = arith.select %47, %48, %49 : vector<8x128xi1>, vector<8x128xf32>
    %51 = vector.extract_strided_slice %19 {offsets = [2, 0], sizes = [1, 128], strides = [1, 1]} : vector<4x128xf32> to vector<1x128xf32>
    %52 = vector.broadcast %51 : vector<1x128xf32> to vector<8x128xf32>
    %53 = arith.mulf %50, %52 : vector<8x128xf32>
    %54 = arith.addf %45, %53 : vector<8x128xf32>
    %55 = arith.negf %54 : vector<8x128xf32>
    %56 = math.exp %55 : vector<8x128xf32>
    %cst_18 = arith.constant 1.000000e+00 : f32
    %57 = vector.broadcast %cst_18 : f32 to vector<8x128xf32>
    %58 = arith.addf %57, %56 : vector<8x128xf32>
    %59 = arith.divf %57, %58 : vector<8x128xf32>
    %60 = arith.mulf %54, %59 : vector<8x128xf32>
    %61 = arith.truncf %60 : vector<8x128xf32> to vector<8x128xbf16>
    %c0_19 = arith.constant 0 : index
    %c0_20 = arith.constant 0 : index
    %62 = vector.load %arg6[%c0_19, %c0_20] : memref<128x160xbf16, #tpu.memory_space<vmem>>, vector<128x160xbf16>
    %cst_21 = arith.constant dense<0.000000e+00> : vector<8x160xf32>
    %63 = tpu.matmul %61, %62, %cst_21 {dimension_numbers = #tpu.dot_dimension_numbers<[1], [0], [0], [1], [0, 0, 1, 1], [], []>} : vector<8x128xbf16>, vector<128x160xbf16>, vector<8x160xf32> -> vector<8x160xf32>
    %64 = vector.extract_strided_slice %63 {offsets = [0, 0], sizes = [8, 128], strides = [1, 1]} : vector<8x160xf32> to vector<8x128xf32>
    %c0_22 = arith.constant 0 : index
    %c0_23 = arith.constant 0 : index
    %65 = vector.load %arg7[%c0_22, %c0_23] : memref<1x128xf32, #tpu.memory_space<vmem>>, vector<1x128xf32>
    %66 = vector.broadcast %65 : vector<1x128xf32> to vector<8x128xf32>
    %67 = arith.addf %64, %66 : vector<8x128xf32>
    %cst_24 = arith.constant 0.000000e+00 : f32
    %68 = vector.broadcast %cst_24 : f32 to vector<8x128xf32>
    %69 = arith.maximumf %67, %68 : vector<8x128xf32>
    %70 = math.absf %67 : vector<8x128xf32>
    %cst_25 = arith.constant 0.000000e+00 : f32
    %71 = vector.broadcast %cst_25 : f32 to vector<8x128xf32>
    %72 = arith.subf %71, %70 : vector<8x128xf32>
    %73 = math.exp %72 : vector<8x128xf32>
    %74 = math.log1p %73 : vector<8x128xf32>
    %75 = arith.addf %69, %74 : vector<8x128xf32>
    %76 = vector.extract_strided_slice %63 {offsets = [0, 128], sizes = [8, 16], strides = [1, 1]} : vector<8x160xf32> to vector<8x16xf32>
    %77 = vector.extract_strided_slice %63 {offsets = [0, 144], sizes = [8, 16], strides = [1, 1]} : vector<8x160xf32> to vector<8x16xf32>
    %c0_26 = arith.constant 0 : index
    %c0_27 = arith.constant 0 : index
    %78 = vector.load %arg8[%c0_26, %c0_27] : memref<16x128xf32, #tpu.memory_space<vmem>>, vector<16x128xf32>
    %79 = vector.shape_cast %75 : vector<8x128xf32> to vector<8x1x128xf32>
    %80 = vector.shape_cast %78 : vector<16x128xf32> to vector<1x16x128xf32>
    %81 = vector.broadcast %79 : vector<8x1x128xf32> to vector<8x16x128xf32>
    %82 = vector.broadcast %80 : vector<1x16x128xf32> to vector<8x16x128xf32>
    %83 = arith.mulf %81, %82 : vector<8x16x128xf32>
    %84 = math.exp %83 : vector<8x16x128xf32>
    %85 = arith.mulf %75, %60 : vector<8x128xf32>
    %86 = vector.shape_cast %85 : vector<8x128xf32> to vector<8x1x128xf32>
    %87 = vector.shape_cast %76 : vector<8x16xf32> to vector<8x16x1xf32>
    %88 = vector.broadcast %86 : vector<8x1x128xf32> to vector<8x16x128xf32>
    %89 = vector.broadcast %87 : vector<8x16x1xf32> to vector<8x16x128xf32>
    %90 = arith.mulf %88, %89 : vector<8x16x128xf32>
    %91 = vector.shape_cast %77 : vector<8x16xf32> to vector<8x16x1xf32>
    %92 = vector.shape_cast %91 : vector<8x16x1xf32> to vector<8x16x1xf32>
    %93 = vector.broadcast %92 : vector<8x16x1xf32> to vector<8x16x128xf32>
    %cst_28 = arith.constant 0.000000e+00 : f32
    %94 = vector.broadcast %cst_28 : f32 to vector<16x128xf32>
    %95 = vector.extract_strided_slice %84 {offsets = [0, 0, 0], sizes = [1, 16, 128], strides = [1, 1, 1]} : vector<8x16x128xf32> to vector<1x16x128xf32>
    %96 = vector.shape_cast %95 : vector<1x16x128xf32> to vector<16x128xf32>
    %97 = arith.mulf %96, %94 : vector<16x128xf32>
    %98 = vector.extract_strided_slice %90 {offsets = [0, 0, 0], sizes = [1, 16, 128], strides = [1, 1, 1]} : vector<8x16x128xf32> to vector<1x16x128xf32>
    %99 = vector.shape_cast %98 : vector<1x16x128xf32> to vector<16x128xf32>
    %100 = arith.addf %97, %99 : vector<16x128xf32>
    %101 = vector.extract_strided_slice %93 {offsets = [0, 0, 0], sizes = [1, 16, 128], strides = [1, 1, 1]} : vector<8x16x128xf32> to vector<1x16x128xf32>
    %102 = vector.shape_cast %101 : vector<1x16x128xf32> to vector<16x128xf32>
    %103 = arith.mulf %100, %102 : vector<16x128xf32>
    %cst_29 = arith.constant dense<0.000000e+00> : vector<128xf32>
    %104 = vector.multi_reduction <add>, %103, %cst_29 [0] : vector<16x128xf32> to vector<128xf32>
    %105 = vector.shape_cast %104 : vector<128xf32> to vector<1x128xf32>
    %106 = vector.extract_strided_slice %84 {offsets = [1, 0, 0], sizes = [1, 16, 128], strides = [1, 1, 1]} : vector<8x16x128xf32> to vector<1x16x128xf32>
    %107 = vector.shape_cast %106 : vector<1x16x128xf32> to vector<16x128xf32>
    %108 = arith.mulf %107, %100 : vector<16x128xf32>
    %109 = vector.extract_strided_slice %90 {offsets = [1, 0, 0], sizes = [1, 16, 128], strides = [1, 1, 1]} : vector<8x16x128xf32> to vector<1x16x128xf32>
    %110 = vector.shape_cast %109 : vector<1x16x128xf32> to vector<16x128xf32>
    %111 = arith.addf %108, %110 : vector<16x128xf32>
    %112 = vector.extract_strided_slice %93 {offsets = [1, 0, 0], sizes = [1, 16, 128], strides = [1, 1, 1]} : vector<8x16x128xf32> to vector<1x16x128xf32>
    %113 = vector.shape_cast %112 : vector<1x16x128xf32> to vector<16x128xf32>
    %114 = arith.mulf %111, %113 : vector<16x128xf32>
    %cst_30 = arith.constant dense<0.000000e+00> : vector<128xf32>
    %115 = vector.multi_reduction <add>, %114, %cst_30 [0] : vector<16x128xf32> to vector<128xf32>
    %116 = vector.shape_cast %115 : vector<128xf32> to vector<1x128xf32>
    %117 = vector.extract_strided_slice %84 {offsets = [2, 0, 0], sizes = [1, 16, 128], strides = [1, 1, 1]} : vector<8x16x128xf32> to vector<1x16x128xf32>
    %118 = vector.shape_cast %117 : vector<1x16x128xf32> to vector<16x128xf32>
    %119 = arith.mulf %118, %111 : vector<16x128xf32>
    %120 = vector.extract_strided_slice %90 {offsets = [2, 0, 0], sizes = [1, 16, 128], strides = [1, 1, 1]} : vector<8x16x128xf32> to vector<1x16x128xf32>
    %121 = vector.shape_cast %120 : vector<1x16x128xf32> to vector<16x128xf32>
    %122 = arith.addf %119, %121 : vector<16x128xf32>
    %123 = vector.extract_strided_slice %93 {offsets = [2, 0, 0], sizes = [1, 16, 128], strides = [1, 1, 1]} : vector<8x16x128xf32> to vector<1x16x128xf32>
    %124 = vector.shape_cast %123 : vector<1x16x128xf32> to vector<16x128xf32>
    %125 = arith.mulf %122, %124 : vector<16x128xf32>
    %cst_31 = arith.constant dense<0.000000e+00> : vector<128xf32>
    %126 = vector.multi_reduction <add>, %125, %cst_31 [0] : vector<16x128xf32> to vector<128xf32>
    %127 = vector.shape_cast %126 : vector<128xf32> to vector<1x128xf32>
    %128 = vector.extract_strided_slice %84 {offsets = [3, 0, 0], sizes = [1, 16, 128], strides = [1, 1, 1]} : vector<8x16x128xf32> to vector<1x16x128xf32>
    %129 = vector.shape_cast %128 : vector<1x16x128xf32> to vector<16x128xf32>
    %130 = arith.mulf %129, %122 : vector<16x128xf32>
    %131 = vector.extract_strided_slice %90 {offsets = [3, 0, 0], sizes = [1, 16, 128], strides = [1, 1, 1]} : vector<8x16x128xf32> to vector<1x16x128xf32>
    %132 = vector.shape_cast %131 : vector<1x16x128xf32> to vector<16x128xf32>
    %133 = arith.addf %130, %132 : vector<16x128xf32>
    %134 = vector.extract_strided_slice %93 {offsets = [3, 0, 0], sizes = [1, 16, 128], strides = [1, 1, 1]} : vector<8x16x128xf32> to vector<1x16x128xf32>
    %135 = vector.shape_cast %134 : vector<1x16x128xf32> to vector<16x128xf32>
    %136 = arith.mulf %133, %135 : vector<16x128xf32>
    %cst_32 = arith.constant dense<0.000000e+00> : vector<128xf32>
    %137 = vector.multi_reduction <add>, %136, %cst_32 [0] : vector<16x128xf32> to vector<128xf32>
    %138 = vector.shape_cast %137 : vector<128xf32> to vector<1x128xf32>
    %139 = vector.extract_strided_slice %84 {offsets = [4, 0, 0], sizes = [1, 16, 128], strides = [1, 1, 1]} : vector<8x16x128xf32> to vector<1x16x128xf32>
    %140 = vector.shape_cast %139 : vector<1x16x128xf32> to vector<16x128xf32>
    %141 = arith.mulf %140, %133 : vector<16x128xf32>
    %142 = vector.extract_strided_slice %90 {offsets = [4, 0, 0], sizes = [1, 16, 128], strides = [1, 1, 1]} : vector<8x16x128xf32> to vector<1x16x128xf32>
    %143 = vector.shape_cast %142 : vector<1x16x128xf32> to vector<16x128xf32>
    %144 = arith.addf %141, %143 : vector<16x128xf32>
    %145 = vector.extract_strided_slice %93 {offsets = [4, 0, 0], sizes = [1, 16, 128], strides = [1, 1, 1]} : vector<8x16x128xf32> to vector<1x16x128xf32>
    %146 = vector.shape_cast %145 : vector<1x16x128xf32> to vector<16x128xf32>
    %147 = arith.mulf %144, %146 : vector<16x128xf32>
    %cst_33 = arith.constant dense<0.000000e+00> : vector<128xf32>
    %148 = vector.multi_reduction <add>, %147, %cst_33 [0] : vector<16x128xf32> to vector<128xf32>
    %149 = vector.shape_cast %148 : vector<128xf32> to vector<1x128xf32>
    %150 = vector.extract_strided_slice %84 {offsets = [5, 0, 0], sizes = [1, 16, 128], strides = [1, 1, 1]} : vector<8x16x128xf32> to vector<1x16x128xf32>
    %151 = vector.shape_cast %150 : vector<1x16x128xf32> to vector<16x128xf32>
    %152 = arith.mulf %151, %144 : vector<16x128xf32>
    %153 = vector.extract_strided_slice %90 {offsets = [5, 0, 0], sizes = [1, 16, 128], strides = [1, 1, 1]} : vector<8x16x128xf32> to vector<1x16x128xf32>
    %154 = vector.shape_cast %153 : vector<1x16x128xf32> to vector<16x128xf32>
    %155 = arith.addf %152, %154 : vector<16x128xf32>
    %156 = vector.extract_strided_slice %93 {offsets = [5, 0, 0], sizes = [1, 16, 128], strides = [1, 1, 1]} : vector<8x16x128xf32> to vector<1x16x128xf32>
    %157 = vector.shape_cast %156 : vector<1x16x128xf32> to vector<16x128xf32>
    %158 = arith.mulf %155, %157 : vector<16x128xf32>
    %cst_34 = arith.constant dense<0.000000e+00> : vector<128xf32>
    %159 = vector.multi_reduction <add>, %158, %cst_34 [0] : vector<16x128xf32> to vector<128xf32>
    %160 = vector.shape_cast %159 : vector<128xf32> to vector<1x128xf32>
    %161 = vector.extract_strided_slice %84 {offsets = [6, 0, 0], sizes = [1, 16, 128], strides = [1, 1, 1]} : vector<8x16x128xf32> to vector<1x16x128xf32>
    %162 = vector.shape_cast %161 : vector<1x16x128xf32> to vector<16x128xf32>
    %163 = arith.mulf %162, %155 : vector<16x128xf32>
    %164 = vector.extract_strided_slice %90 {offsets = [6, 0, 0], sizes = [1, 16, 128], strides = [1, 1, 1]} : vector<8x16x128xf32> to vector<1x16x128xf32>
    %165 = vector.shape_cast %164 : vector<1x16x128xf32> to vector<16x128xf32>
    %166 = arith.addf %163, %165 : vector<16x128xf32>
    %167 = vector.extract_strided_slice %93 {offsets = [6, 0, 0], sizes = [1, 16, 128], strides = [1, 1, 1]} : vector<8x16x128xf32> to vector<1x16x128xf32>
    %168 = vector.shape_cast %167 : vector<1x16x128xf32> to vector<16x128xf32>
    %169 = arith.mulf %166, %168 : vector<16x128xf32>
    %cst_35 = arith.constant dense<0.000000e+00> : vector<128xf32>
    %170 = vector.multi_reduction <add>, %169, %cst_35 [0] : vector<16x128xf32> to vector<128xf32>
    %171 = vector.shape_cast %170 : vector<128xf32> to vector<1x128xf32>
    %172 = vector.extract_strided_slice %84 {offsets = [7, 0, 0], sizes = [1, 16, 128], strides = [1, 1, 1]} : vector<8x16x128xf32> to vector<1x16x128xf32>
    %173 = vector.shape_cast %172 : vector<1x16x128xf32> to vector<16x128xf32>
    %174 = arith.mulf %173, %166 : vector<16x128xf32>
    %175 = vector.extract_strided_slice %90 {offsets = [7, 0, 0], sizes = [1, 16, 128], strides = [1, 1, 1]} : vector<8x16x128xf32> to vector<1x16x128xf32>
    %176 = vector.shape_cast %175 : vector<1x16x128xf32> to vector<16x128xf32>
    %177 = arith.addf %174, %176 : vector<16x128xf32>
    %178 = vector.extract_strided_slice %93 {offsets = [7, 0, 0], sizes = [1, 16, 128], strides = [1, 1, 1]} : vector<8x16x128xf32> to vector<1x16x128xf32>
    %179 = vector.shape_cast %178 : vector<1x16x128xf32> to vector<16x128xf32>
    %180 = arith.mulf %177, %179 : vector<16x128xf32>
    %cst_36 = arith.constant dense<0.000000e+00> : vector<128xf32>
    %181 = vector.multi_reduction <add>, %180, %cst_36 [0] : vector<16x128xf32> to vector<128xf32>
    %182 = vector.shape_cast %181 : vector<128xf32> to vector<1x128xf32>
    %183 = tpu.concatenate %105, %116, %127, %138, %149, %160, %171, %182 in 0 : vector<1x128xf32>, vector<1x128xf32>, vector<1x128xf32>, vector<1x128xf32>, vector<1x128xf32>, vector<1x128xf32>, vector<1x128xf32>, vector<1x128xf32> -> vector<8x128xf32>
    %c0_37 = arith.constant 0 : index
    %c0_38 = arith.constant 0 : index
    %184 = vector.load %arg9[%c0_37, %c0_38] : memref<1x128xf32, #tpu.memory_space<vmem>>, vector<1x128xf32>
    %185 = vector.broadcast %184 : vector<1x128xf32> to vector<8x128xf32>
    %186 = arith.mulf %60, %185 : vector<8x128xf32>
    %187 = arith.addf %183, %186 : vector<8x128xf32>
    %188 = arith.negf %18 : vector<8x128xf32>
    %189 = math.exp %188 : vector<8x128xf32>
    %cst_39 = arith.constant 1.000000e+00 : f32
    %190 = vector.broadcast %cst_39 : f32 to vector<8x128xf32>
    %191 = arith.addf %190, %189 : vector<8x128xf32>
    %192 = arith.divf %190, %191 : vector<8x128xf32>
    %193 = arith.mulf %18, %192 : vector<8x128xf32>
    %194 = arith.mulf %187, %193 : vector<8x128xf32>
    %195 = arith.truncf %194 : vector<8x128xf32> to vector<8x128xbf16>
    %c0_40 = arith.constant 0 : index
    %c0_41 = arith.constant 0 : index
    %196 = vector.load %arg10[%c0_40, %c0_41] : memref<128x32xbf16, #tpu.memory_space<vmem>>, vector<128x32xbf16>
    %cst_42 = arith.constant dense<0.000000e+00> : vector<8x32xf32>
    %197 = tpu.matmul %195, %196, %cst_42 {dimension_numbers = #tpu.dot_dimension_numbers<[1], [0], [0], [1], [0, 0, 1, 1], [], []>} : vector<8x128xbf16>, vector<128x32xbf16>, vector<8x32xf32> -> vector<8x32xf32>
    %198 = arith.addf %0, %197 : vector<8x32xf32>
    %c0_43 = arith.constant 0 : index
    %c0_44 = arith.constant 0 : index
    %199 = vector.load %arg11[%c0_43, %c0_44] : memref<8x32xf32, #tpu.memory_space<vmem>>, vector<8x32xf32>
    tpu.vector_store %arg11[%c0_43, %c0_44], %198 {strides = array<i32>} : memref<8x32xf32, #tpu.memory_space<vmem>>, vector<8x32xf32>,
    return
  }
  func.func @transform_0(%arg0: i32) -> (i32, i32) {
    %c0_i32 = arith.constant 0 : i32
    %c0_i32_0 = arith.constant 0 : i32
    %c0_i32_1 = arith.constant 0 : i32
    return %c0_i32, %c0_i32_0 : i32, i32
  }
  func.func @transform_1(%arg0: i32) -> (i32, i32) {
    %c0_i32 = arith.constant 0 : i32
    %c0_i32_0 = arith.constant 0 : i32
    %c0_i32_1 = arith.constant 0 : i32
    return %c0_i32, %c0_i32_0 : i32, i32
  }
  func.func @transform_2(%arg0: i32) -> (i32, i32) {
    %c0_i32 = arith.constant 0 : i32
    %c0_i32_0 = arith.constant 0 : i32
    %c0_i32_1 = arith.constant 0 : i32
    return %c0_i32, %c0_i32_0 : i32, i32
  }
  func.func @transform_3(%arg0: i32) -> (i32, i32) {
    %c0_i32 = arith.constant 0 : i32
    %c0_i32_0 = arith.constant 0 : i32
    %c0_i32_1 = arith.constant 0 : i32
    return %c0_i32, %c0_i32_0 : i32, i32
  }
  func.func @transform_4(%arg0: i32) -> (i32, i32) {
    %c0_i32 = arith.constant 0 : i32
    %c0_i32_0 = arith.constant 0 : i32
    %c0_i32_1 = arith.constant 0 : i32
    return %c0_i32, %c0_i32_0 : i32, i32
  }
  func.func @transform_5(%arg0: i32) -> (i32, i32) {
    %c0_i32 = arith.constant 0 : i32
    %c0_i32_0 = arith.constant 0 : i32
    %c0_i32_1 = arith.constant 0 : i32
    return %c0_i32, %c0_i32_0 : i32, i32
  }
  func.func @transform_6(%arg0: i32) -> (i32, i32) {
    %c0_i32 = arith.constant 0 : i32
    %c0_i32_0 = arith.constant 0 : i32
    %c0_i32_1 = arith.constant 0 : i32
    return %c0_i32, %c0_i32_0 : i32, i32
  }
  func.func @transform_7(%arg0: i32) -> (i32, i32) {
    %c0_i32 = arith.constant 0 : i32
    %c0_i32_0 = arith.constant 0 : i32
    %c0_i32_1 = arith.constant 0 : i32
    return %c0_i32, %c0_i32_0 : i32, i32
  }
  func.func @transform_8(%arg0: i32) -> (i32, i32) {
    %c0_i32 = arith.constant 0 : i32
    %c0_i32_0 = arith.constant 0 : i32
    %c0_i32_1 = arith.constant 0 : i32
    return %c0_i32, %c0_i32_0 : i32, i32
  }
  func.func @transform_9(%arg0: i32) -> (i32, i32) {
    %c0_i32 = arith.constant 0 : i32
    %c0_i32_0 = arith.constant 0 : i32
    %c0_i32_1 = arith.constant 0 : i32
    return %c0_i32, %c0_i32_0 : i32, i32
  }
  func.func @transform_10(%arg0: i32) -> (i32, i32) {
    %c0_i32 = arith.constant 0 : i32
    %c0_i32_0 = arith.constant 0 : i32
    %c0_i32_1 = arith.constant 0 : i32
    return %c0_i32, %c0_i32_0 : i32, i32
  }
}

</mosaic_0001>

<llo_original>
// kernel: tpu_custom_call.1
$region0: #{tpu_custom_call.1}
  #allocation0 [shape = 'u32[]', space=smem, size = 0x4, offset = 0x4, fixed_abs, tag = 'smem constant byte address 0x4 - core index']
  #allocation1 [shape = 'u32[144,128]{1,0:T(1,128)}', space=vmem, size = 0x12000, scoped, tag = 'internal scratch']
  %s0 = inlined_call_operand.vmem [shape: f32[8,32], index: 0, kind: input, shape index: {}]
  %s1 = inlined_call_operand.vmem [shape: f32[1,32], index: 1, kind: input, shape index: {}]
  %s2 = inlined_call_operand.vmem [shape: bf16[32,256], index: 2, kind: input, shape index: {}]
  %s3 = inlined_call_operand.vmem [shape: f32[4,128], index: 3, kind: input, shape index: {}]
  %s4 = inlined_call_operand.vmem [shape: f32[1,128], index: 4, kind: input, shape index: {}]
  %s5 = inlined_call_operand.vmem [shape: bf16[128,160], index: 5, kind: input, shape index: {}]
  %s6 = inlined_call_operand.vmem [shape: f32[1,128], index: 6, kind: input, shape index: {}]
  %s7 = inlined_call_operand.vmem [shape: f32[16,128], index: 7, kind: input, shape index: {}]
  %s8 = inlined_call_operand.vmem [shape: f32[1,128], index: 8, kind: input, shape index: {}]
  %s9 = inlined_call_operand.vmem [shape: bf16[128,32], index: 9, kind: input, shape index: {}]
  %s10 = inlined_call_operand.hbm [shape: f32[8,32], index: 10, kind: output, shape index: {}]
  %s11 = sld [smem:[#allocation0]]
  $region50: #{tpu_custom_call.1} parent=0
    _
  %s13 = ssub.s32 1, %s11
  %s14 = scalar_select 0, %s13, %s11
  $region1: #{tpu_custom_call.1} parent=0
    #allocation2 [shape = 'u8[4096]{0}', space=vmem, size = 0x1000, scoped, tag = 'output window, operand 0, single buffered']
    #allocation3 [shape = 's32[1]{0}', space=sflag, size = 0x4, scoped, tag = 'scoped memory for tpu_custom_call.1']
    %15 = vsyncpa [#allocation3], 0
    // Predicated region
    $region2: #{tpu_custom_call.1} parent=1 // pred_check
      _
    $region3: #{tpu_custom_call.1} parent=1 // pred_check_branch
      %17 = sbr.rel (0) target = $region5
    $region4: #{tpu_custom_call.1} parent=1 // pred_region
      _
    $region5: #{tpu_custom_call.1} parent=1 // pred_fallthru
      _
    // Predicated region
    $region6: #{tpu_custom_call.1} parent=1 // pred_check
      _
    $region7: #{tpu_custom_call.1} parent=1 // pred_check_branch
      %19 = sbr.rel (0) target = $region9
    $region8: #{tpu_custom_call.1} parent=1 // pred_region
      _
    $region9: #{tpu_custom_call.1} parent=1 // pred_fallthru
      _
    // Predicated region
    $region10: #{tpu_custom_call.1} parent=1 // pred_check
      _
    $region11: #{tpu_custom_call.1} parent=1 // pred_check_branch
      %21 = sbr.rel (0) target = $region13
    $region12: #{tpu_custom_call.1} parent=1 // pred_region
      _
    $region13: #{tpu_custom_call.1} parent=1 // pred_fallthru
      _
    // Predicated region
    $region14: #{tpu_custom_call.1} parent=1 // pred_check
      _
    $region15: #{tpu_custom_call.1} parent=1 // pred_check_branch
      %23 = sbr.rel (0) target = $region17
    $region16: #{tpu_custom_call.1} parent=1 // pred_region
      _
    $region17: #{tpu_custom_call.1} parent=1 // pred_fallthru
      _
    // Predicated region
    $region18: #{tpu_custom_call.1} parent=1 // pred_check
      _
    $region19: #{tpu_custom_call.1} parent=1 // pred_check_branch
      %25 = sbr.rel (0) target = $region21
    $region20: #{tpu_custom_call.1} parent=1 // pred_region
      _
    $region21: #{tpu_custom_call.1} parent=1 // pred_fallthru
      _
    // Predicated region
    $region22: #{tpu_custom_call.1} parent=1 // pred_check
      _
    $region23: #{tpu_custom_call.1} parent=1 // pred_check_branch
      %27 = sbr.rel (0) target = $region25
    $region24: #{tpu_custom_call.1} parent=1 // pred_region
      _
    $region25: #{tpu_custom_call.1} parent=1 // pred_fallthru
      _
    // Predicated region
    $region26: #{tpu_custom_call.1} parent=1 // pred_check
      _
    $region27: #{tpu_custom_call.1} parent=1 // pred_check_branch
      %29 = sbr.rel (0) target = $region29
    $region28: #{tpu_custom_call.1} parent=1 // pred_region
      _
    $region29: #{tpu_custom_call.1} parent=1 // pred_fallthru
      _
    // Predicated region
    $region30: #{tpu_custom_call.1} parent=1 // pred_check
      _
    $region31: #{tpu_custom_call.1} parent=1 // pred_check_branch
      %31 = sbr.rel (0) target = $region33
    $region32: #{tpu_custom_call.1} parent=1 // pred_region
      _
    $region33: #{tpu_custom_call.1} parent=1 // pred_fallthru
      _
    // Predicated region
    $region34: #{tpu_custom_call.1} parent=1 // pred_check
      _
    $region35: #{tpu_custom_call.1} parent=1 // pred_check_branch
      %33 = sbr.rel (0) target = $region37
    $region36: #{tpu_custom_call.1} parent=1 // pred_region
      _
    $region37: #{tpu_custom_call.1} parent=1 // pred_fallthru
      _
    // Predicated region
    $region38: #{tpu_custom_call.1} parent=1 // pred_check
      _
    $region39: #{tpu_custom_call.1} parent=1 // pred_check_branch
      %35 = sbr.rel (0) target = $region41
    $region40: #{tpu_custom_call.1} parent=1 // pred_region
      _
    $region41: #{tpu_custom_call.1} parent=1 // pred_fallthru
      _
    %v37 = vld [vmem:[%s0] sm:$0xff]
    %v38 = vmul.f32 %v37, %v37
    %vm39 = vcmask 261120
    %v40 = vsel %vm39, %v38, 0.0
    %41 = vadd.xlane.f32.xlu0 %v40
    %v42 = vpop.xlane.xlu0 %41
    %v43 = vrcp.pop 32.0
    %v44 = vmul.f32 %v42, %v43
    %v45 = vadd.f32 %v44, 1e-05
    %v46 = vrsqrt.pop %v45
    %v47 = vmul.f32 %v37, %v46
    %v48 = vld [vmem:[%s1] sm:$0x1]
    %v50 = vlaneseq
    %v51 = vshrl.u32 %v50, 7
    %v52 = vsub.s32 0, %v51
    %v53 = vrot.slane %v48, %v52
    %v55 = vmul.f32 %v47, %v53
    %v56 = vpack.c.bf16 %v55, %v55
    %v57 = vld [vmem:[%s2] sm:$0xff]
    %v58 = vld [vmem:[%s2 + $0x8] sm:$0xff]
    %v59 = vld [vmem:[%s2 + $0x10] sm:$0xff]
    %v60 = vld [vmem:[%s2 + $0x18] sm:$0xff]
    %v65 = vunpack.c.l.b16 %v57
    %v66 = vunpack.c.h.b16 %v57
    %v67 = vunpack.c.l.b16 %v58
    %v68 = vunpack.c.h.b16 %v58
    %v69 = vunpack.c.l.b16 %v59
    %v70 = vunpack.c.h.b16 %v59
    %v71 = vunpack.c.l.b16 %v60
    %v72 = vunpack.c.h.b16 %v60
    %v73 = vpack.c.b16 %v67, %v65
    %v74 = vpack.c.b16 %v68, %v66
    %v75 = vpack.c.b16 %v71, %v69
    %v76 = vpack.c.b16 %v72, %v70
    %v82 = vsel %vm39, %v56, 0
    %84 = vmatprep.subr.bf16.mxu0 %v74
    %85 = vmatpush1.bf16.msra.mxu0 %v73
    %86 = vmatprep.subr.bf16.mxu0 %v76
    %87 = vmatpush1.bf16.msra.mxu0 %v75
    %88 = vmatprep.subr.bf16.mxu0 0
    %89 = vmatpush1.bf16.msra.mxu0 0
    %90 = vmatprep.subr.bf16.mxu0 0
    %91 = vmatpush1.bf16.msra.mxu0 0
    %92 = vmatprep.subr.bf16.mxu0 0
    %93 = vmatpush1.bf16.msra.mxu0 0
    %94 = vmatprep.subr.bf16.mxu0 0
    %95 = vmatpush1.bf16.msra.mxu0 0
    %96 = vmatprep.subr.bf16.mxu0 0
    %97 = vmatpush1.bf16.msra.mxu0 0
    %98 = vmatprep.subr.bf16.mxu0 0
    %99 = vmatpush1.bf16.msra.mxu0 0
    %100 = vmatprep.subr.bf16.mxu0 0
    %101 = vmatpush1.bf16.msra.mxu0 0
    %102 = vmatprep.subr.bf16.mxu0 0
    %103 = vmatpush1.bf16.msra.mxu0 0
    %104 = vmatprep.subr.bf16.mxu0 0
    %105 = vmatpush1.bf16.msra.mxu0 0
    %106 = vmatprep.subr.bf16.mxu0 0
    %107 = vmatpush1.bf16.msra.mxu0 0
    %108 = vmatprep.subr.bf16.mxu0 0
    %109 = vmatpush1.bf16.msra.mxu0 0
    %110 = vmatprep.subr.bf16.mxu0 0
    %111 = vmatpush1.bf16.msra.mxu0 0
    %112 = vmatprep.subr.bf16.mxu0 0
    %113 = vmatpush1.bf16.msra.mxu0 0
    %114 = vmatprep.subr.bf16.mxu0 0
    %115 = vmatpush1.bf16.msra.mxu0 0
    %116 = vmatprep.mubr.bf16.mxu0 0
    %117 = vmatmul.mubr.bf16.gmra.mrb[0].mxu0 %v82
    %v118 = vpop.f32.mrb[0].mxu0
    %v119 = vadd.f32 0.0, %v118
    %v120 = vpop.f32.mrb[0].mxu0
    %v121 = vadd.f32 0.0, %v120
    %v122 = vpop.f32.mrb[0].mxu0
    %v123 = vpop.f32.mrb[0].mxu0
    %124 = vdwg.mxu0
    %v125 = vld [vmem:[%s3] sm:$0xf]
    %v126 = vlaneseq
    %v127 = vshrl.u32 %v126, 7
    %v128 = vld [vmem:[%s4] sm:$0x1]
    %v130 = vlaneseq
    %v131 = vshrl.u32 %v130, 7
    %v132 = vsub.s32 0, %v131
    %v133 = vrot.slane %v128, %v132
    %v135 = vlaneseq
    %v136 = vshrl.u32 %v135, 7
    %v137 = vsub.s32 3, %v136
    %v138 = vrot.slane %v125, %v137
    %v139 = vmul.f32 %v119, %v138
    %v140 = vadd.f32 %v133, %v139
    %vm141 = vcmp.ge.s32.totalorder %v127, 3
    %v142 = vrot.slane %v119, 5
    %v143 = vsel %vm141, %v142, 0.0
    %v144 = vlaneseq
    %v145 = vshrl.u32 %v144, 7
    %v146 = vsub.s32 0, %v145
    %v147 = vrot.slane %v125, %v146
    %v148 = vmul.f32 %v143, %v147
    %v149 = vadd.f32 %v140, %v148
    %vm150 = vcmp.ge.s32.totalorder %v127, 2
    %v151 = vrot.slane %v119, 6
    %v152 = vsel %vm150, %v151, 0.0
    %v153 = vlaneseq
    %v154 = vshrl.u32 %v153, 7
    %v155 = vsub.s32 1, %v154
    %v156 = vrot.slane %v125, %v155
    %v157 = vmul.f32 %v152, %v156
    %v158 = vadd.f32 %v149, %v157
    %vm159 = vcmp.ge.s32.totalorder %v127, 1
    %v160 = vrot.slane %v119, 7
    %v161 = vsel %vm159, %v160, 0.0
    %v162 = vlaneseq
    %v163 = vshrl.u32 %v162, 7
    %v164 = vsub.s32 2, %v163
    %v165 = vrot.slane %v125, %v164
    %v166 = vmul.f32 %v161, %v165
    %v167 = vadd.f32 %v158, %v166
    %v168 = vxor.u32 %v167, 2147483648
    %v169 = vmul.f32 %v168, 1.442695
    %v170 = vpow.pop %v169
    %v171 = vadd.f32 %v170, 1.0
    %v172 = vrcp.pop %v171
    %v173 = vmul.f32 1.0, %v172
    %v174 = vmul.f32 %v167, %v173
    %v175 = vpack.c.bf16 %v174, %v174
    %v176 = vld [vmem:[%s5] sm:$0xff]
    %v177 = vld [vmem:[%s5 + $0x8] sm:$0xff]
    %v178 = vld [vmem:[%s5 + $0x10] sm:$0xff]
    %v179 = vld [vmem:[%s5 + $0x18] sm:$0xff]
    %v180 = vld [vmem:[%s5 + $0x20] sm:$0xff]
    %v181 = vld [vmem:[%s5 + $0x28] sm:$0xff]
    %v182 = vld [vmem:[%s5 + $0x30] sm:$0xff]
    %v183 = vld [vmem:[%s5 + $0x38] sm:$0xff]
    %v184 = vld [vmem:[%s5 + $0x40] sm:$0xff]
    %v185 = vld [vmem:[%s5 + $0x48] sm:$0xff]
    %v186 = vld [vmem:[%s5 + $0x50] sm:$0xff]
    %v187 = vld [vmem:[%s5 + $0x58] sm:$0xff]
    %v188 = vld [vmem:[%s5 + $0x60] sm:$0xff]
    %v189 = vld [vmem:[%s5 + $0x68] sm:$0xff]
    %v190 = vld [vmem:[%s5 + $0x70] sm:$0xff]
    %v191 = vld [vmem:[%s5 + $0x78] sm:$0xff]
    %v208 = vunpack.c.l.b16 %v176
    %v209 = vunpack.c.h.b16 %v176
    %v210 = vunpack.c.l.b16 %v177
    %v211 = vunpack.c.h.b16 %v177
    %v212 = vunpack.c.l.b16 %v178
    %v213 = vunpack.c.h.b16 %v178
    %v214 = vunpack.c.l.b16 %v179
    %v215 = vunpack.c.h.b16 %v179
    %v216 = vunpack.c.l.b16 %v180
    %v217 = vunpack.c.h.b16 %v180
    %v218 = vunpack.c.l.b16 %v181
    %v219 = vunpack.c.h.b16 %v181
    %v220 = vunpack.c.l.b16 %v182
    %v221 = vunpack.c.h.b16 %v182
    %v222 = vunpack.c.l.b16 %v183
    %v223 = vunpack.c.h.b16 %v183
    %v224 = vunpack.c.l.b16 %v184
    %v225 = vunpack.c.h.b16 %v184
    %v226 = vunpack.c.l.b16 %v185
    %v227 = vunpack.c.h.b16 %v185
    %v228 = vunpack.c.l.b16 %v186
    %v229 = vunpack.c.h.b16 %v186
    %v230 = vunpack.c.l.b16 %v187
    %v231 = vunpack.c.h.b16 %v187
    %v232 = vunpack.c.l.b16 %v188
    %v233 = vunpack.c.h.b16 %v188
    %v234 = vunpack.c.l.b16 %v189
    %v235 = vunpack.c.h.b16 %v189
    %v236 = vunpack.c.l.b16 %v190
    %v237 = vunpack.c.h.b16 %v190
    %v238 = vunpack.c.l.b16 %v191
    %v239 = vunpack.c.h.b16 %v191
    %v240 = vpack.c.b16 %v210, %v208
    %v241 = vpack.c.b16 %v211, %v209
    %v242 = vpack.c.b16 %v214, %v212
    %v243 = vpack.c.b16 %v215, %v213
    %v244 = vpack.c.b16 %v218, %v216
    %v245 = vpack.c.b16 %v219, %v217
    %v246 = vpack.c.b16 %v222, %v220
    %v247 = vpack.c.b16 %v223, %v221
    %v248 = vpack.c.b16 %v226, %v224
    %v249 = vpack.c.b16 %v227, %v225
    %v250 = vpack.c.b16 %v230, %v228
    %v251 = vpack.c.b16 %v231, %v229
    %v252 = vpack.c.b16 %v234, %v232
    %v253 = vpack.c.b16 %v235, %v233
    %v254 = vpack.c.b16 %v238, %v236
    %v255 = vpack.c.b16 %v239, %v237
    %272 = vmatprep.subr.bf16.mxu0 %v241
    %273 = vmatpush1.bf16.msra.mxu0 %v240
    %274 = vmatprep.subr.bf16.mxu0 %v243
    %275 = vmatpush1.bf16.msra.mxu0 %v242
    %276 = vmatprep.subr.bf16.mxu0 %v245
    %277 = vmatpush1.bf16.msra.mxu0 %v244
    %278 = vmatprep.subr.bf16.mxu0 %v247
    %279 = vmatpush1.bf16.msra.mxu0 %v246
    %280 = vmatprep.subr.bf16.mxu0 %v249
    %281 = vmatpush1.bf16.msra.mxu0 %v248
    %282 = vmatprep.subr.bf16.mxu0 %v251
    %283 = vmatpush1.bf16.msra.mxu0 %v250
    %284 = vmatprep.subr.bf16.mxu0 %v253
    %285 = vmatpush1.bf16.msra.mxu0 %v252
    %286 = vmatprep.subr.bf16.mxu0 %v255
    %287 = vmatpush1.bf16.msra.mxu0 %v254
    %288 = vmatprep.subr.bf16.mxu0 0
    %289 = vmatpush1.bf16.msra.mxu0 0
    %290 = vmatprep.subr.bf16.mxu0 0
    %291 = vmatpush1.bf16.msra.mxu0 0
    %292 = vmatprep.subr.bf16.mxu0 0
    %293 = vmatpush1.bf16.msra.mxu0 0
    %294 = vmatprep.subr.bf16.mxu0 0
    %295 = vmatpush1.bf16.msra.mxu0 0
    %296 = vmatprep.subr.bf16.mxu0 0
    %297 = vmatpush1.bf16.msra.mxu0 0
    %298 = vmatprep.subr.bf16.mxu0 0
    %299 = vmatpush1.bf16.msra.mxu0 0
    %300 = vmatprep.subr.bf16.mxu0 0
    %301 = vmatpush1.bf16.msra.mxu0 0
    %302 = vmatprep.subr.bf16.mxu0 0
    %303 = vmatpush1.bf16.msra.mxu0 0
    %304 = vmatprep.mubr.bf16.mxu0 0
    %305 = vmatmul.mubr.bf16.gmra.mrb[0].mxu0 %v175
    %v306 = vpop.f32.mrb[0].mxu0
    %v307 = vadd.f32 0.0, %v306
    %v308 = vpop.f32.mrb[0].mxu0
    %v309 = vadd.f32 0.0, %v308
    %v310 = vpop.f32.mrb[0].mxu0
    %v311 = vpop.f32.mrb[0].mxu0
    %312 = vdwg.mxu0
    %v313 = vld [vmem:[%s6] sm:$0x1]
    %v315 = vlaneseq
    %v316 = vshrl.u32 %v315, 7
    %v317 = vsub.s32 0, %v316
    %v318 = vrot.slane %v313, %v317
    %v320 = vadd.f32 %v307, %v318
    %v321 = vmax.f32 %v320, 0.0
    %v322 = vand.u32 2147483647, %v320
    %v323 = vsub.f32 0.0, %v322
    %v324 = vmul.f32 %v323, 1.442695
    %v325 = vpow.pop %v324
    %v326 = vadd.f32 %v325, 1.0
    %v327 = vlog2.pop %v326
    %v328 = vmul.f32 %v327, 0.6931472
    %v329 = vmul.f32 -0.5, %v325
    %v330 = vadd.f32 %v329, 1.0
    %v331 = vmul.f32 %v330, %v325
    %v332 = vand.u32 2147483647, %v325
    %vm333 = vcmp.lt.f32.partialorder %v332, 0.0004427343
    %v334 = vsel %vm333, %v331, %v328
    %v335 = vadd.f32 %v321, %v334
    %v336 = vld [vmem:[%s7] sm:$0xff]
    %v337 = vld [vmem:[%s7 + $0x8] sm:$0xff]
    %v339 = vcombine.high %v335, %v335
    %v341 = vunpack.c.l.s4 1966171168
    %v342 = vunpack.c.0.s8 %v341
    %v343 = vlaneseq
    %v344 = vshrl.u32 %v343, 7
    %v345 = vsub.s32 %v342, %v344
    %v346 = vrot.slane %v335, %v345
    %v348 = vunpack.c.l.s4 1966171168
    %v349 = vunpack.c.0.s8 %v348
    %v350 = vlaneseq
    %v351 = vshrl.u32 %v350, 7
    %v352 = vsub.s32 %v349, %v351
    %v353 = vrot.slane %v339, %v352
    %v354 = vcombine.high %v346, %v346
    %v355 = vcombine.high %v353, %v353
    %v357 = vunpack.c.l.s4 1966171168
    %v358 = vunpack.c.0.s8 %v357
    %v359 = vlaneseq
    %v360 = vshrl.u32 %v359, 7
    %v361 = vsub.s32 %v358, %v360
    %v362 = vrot.slane %v346, %v361
    %v364 = vunpack.c.l.s4 1966171168
    %v365 = vunpack.c.0.s8 %v364
    %v366 = vlaneseq
    %v367 = vshrl.u32 %v366, 7
    %v368 = vsub.s32 %v365, %v367
    %v369 = vrot.slane %v353, %v368
    %v371 = vunpack.c.l.s4 1966171168
    %v372 = vunpack.c.0.s8 %v371
    %v373 = vlaneseq
    %v374 = vshrl.u32 %v373, 7
    %v375 = vsub.s32 %v372, %v374
    %v376 = vrot.slane %v354, %v375
    %v378 = vunpack.c.l.s4 1966171168
    %v379 = vunpack.c.0.s8 %v378
    %v380 = vlaneseq
    %v381 = vshrl.u32 %v380, 7
    %v382 = vsub.s32 %v379, %v381
    %v383 = vrot.slane %v355, %v382
    %v384 = vcombine.high %v362, %v362
    %v385 = vcombine.high %v369, %v369
    %v386 = vcombine.high %v376, %v376
    %v387 = vcombine.high %v383, %v383
    %v388 = vlaneseq
    %v389 = vshrl.u32 %v388, 7
    %v390 = vsub.s32 0, %v389
    %v391 = vrot.slane %v362, %v390
    %v392 = vlaneseq
    %v393 = vshrl.u32 %v392, 7
    %v394 = vsub.s32 0, %v393
    %v395 = vrot.slane %v376, %v394
    %v396 = vlaneseq
    %v397 = vshrl.u32 %v396, 7
    %v398 = vsub.s32 0, %v397
    %v399 = vrot.slane %v384, %v398
    %v400 = vlaneseq
    %v401 = vshrl.u32 %v400, 7
    %v402 = vsub.s32 0, %v401
    %v403 = vrot.slane %v386, %v402
    %v404 = vlaneseq
    %v405 = vshrl.u32 %v404, 7
    %v406 = vsub.s32 0, %v405
    %v407 = vrot.slane %v369, %v406
    %v408 = vlaneseq
    %v409 = vshrl.u32 %v408, 7
    %v410 = vsub.s32 0, %v409
    %v411 = vrot.slane %v383, %v410
    %v412 = vlaneseq
    %v413 = vshrl.u32 %v412, 7
    %v414 = vsub.s32 0, %v413
    %v415 = vrot.slane %v385, %v414
    %v416 = vlaneseq
    %v417 = vshrl.u32 %v416, 7
    %v418 = vsub.s32 0, %v417
    %v419 = vrot.slane %v387, %v418
    %v428 = vmul.f32 %v391, %v336
    %v429 = vmul.f32 %v391, %v337
    %v430 = vmul.f32 %v395, %v336
    %v431 = vmul.f32 %v395, %v337
    %v432 = vmul.f32 %v399, %v336
    %v433 = vmul.f32 %v399, %v337
    %v434 = vmul.f32 %v403, %v336
    %v435 = vmul.f32 %v403, %v337
    %v436 = vmul.f32 %v407, %v336
    %v437 = vmul.f32 %v407, %v337
    %v438 = vmul.f32 %v411, %v336
    %v439 = vmul.f32 %v411, %v337
    %v440 = vmul.f32 %v415, %v336
    %v441 = vmul.f32 %v415, %v337
    %v442 = vmul.f32 %v419, %v336
    %v443 = vmul.f32 %v419, %v337
    %v444 = vmul.f32 %v428, 1.442695
    %v445 = vpow.pop %v444
    %v446 = vmul.f32 %v429, 1.442695
    %v447 = vpow.pop %v446
    %v448 = vmul.f32 %v430, 1.442695
    %v449 = vpow.pop %v448
    %v450 = vmul.f32 %v431, 1.442695
    %v451 = vpow.pop %v450
    %v452 = vmul.f32 %v432, 1.442695
    %v453 = vpow.pop %v452
    %v454 = vmul.f32 %v433, 1.442695
    %v455 = vpow.pop %v454
    %v456 = vmul.f32 %v434, 1.442695
    %v457 = vpow.pop %v456
    %v458 = vmul.f32 %v435, 1.442695
    %v459 = vpow.pop %v458
    %v460 = vmul.f32 %v436, 1.442695
    %v461 = vpow.pop %v460
    %v462 = vmul.f32 %v437, 1.442695
    %v463 = vpow.pop %v462
    %v464 = vmul.f32 %v438, 1.442695
    %v465 = vpow.pop %v464
    %v466 = vmul.f32 %v439, 1.442695
    %v467 = vpow.pop %v466
    %v468 = vmul.f32 %v440, 1.442695
    %v469 = vpow.pop %v468
    %v470 = vmul.f32 %v441, 1.442695
    %v471 = vpow.pop %v470
    %v472 = vmul.f32 %v442, 1.442695
    %v473 = vpow.pop %v472
    %v474 = vmul.f32 %v443, 1.442695
    %v475 = vpow.pop %v474
    %v476 = vmul.f32 %v335, %v174
    %v478 = vcombine.high %v476, %v476
    %v480 = vunpack.c.l.s4 1966171168
    %v481 = vunpack.c.0.s8 %v480
    %v482 = vlaneseq
    %v483 = vshrl.u32 %v482, 7
    %v484 = vsub.s32 %v481, %v483
    %v485 = vrot.slane %v476, %v484
    %v487 = vunpack.c.l.s4 1966171168
    %v488 = vunpack.c.0.s8 %v487
    %v489 = vlaneseq
    %v490 = vshrl.u32 %v489, 7
    %v491 = vsub.s32 %v488, %v490
    %v492 = vrot.slane %v478, %v491
    %v493 = vcombine.high %v485, %v485
    %v494 = vcombine.high %v492, %v492
    %v496 = vunpack.c.l.s4 1966171168
    %v497 = vunpack.c.0.s8 %v496
    %v498 = vlaneseq
    %v499 = vshrl.u32 %v498, 7
    %v500 = vsub.s32 %v497, %v499
    %v501 = vrot.slane %v485, %v500
    %v503 = vunpack.c.l.s4 1966171168
    %v504 = vunpack.c.0.s8 %v503
    %v505 = vlaneseq
    %v506 = vshrl.u32 %v505, 7
    %v507 = vsub.s32 %v504, %v506
    %v508 = vrot.slane %v492, %v507
    %v510 = vunpack.c.l.s4 1966171168
    %v511 = vunpack.c.0.s8 %v510
    %v512 = vlaneseq
    %v513 = vshrl.u32 %v512, 7
    %v514 = vsub.s32 %v511, %v513
    %v515 = vrot.slane %v493, %v514
    %v517 = vunpack.c.l.s4 1966171168
    %v518 = vunpack.c.0.s8 %v517
    %v519 = vlaneseq
    %v520 = vshrl.u32 %v519, 7
    %v521 = vsub.s32 %v518, %v520
    %v522 = vrot.slane %v494, %v521
    %v523 = vcombine.high %v501, %v501
    %v524 = vcombine.high %v508, %v508
    %v525 = vcombine.high %v515, %v515
    %v526 = vcombine.high %v522, %v522
    %v527 = vlaneseq
    %v528 = vshrl.u32 %v527, 7
    %v529 = vsub.s32 0, %v528
    %v530 = vrot.slane %v309, %v529
    %532 = vbcast.lane.b32.xlu0 %v530, 256
    %v533 = vpop.permute.xlu0 %532
    %s535 = sor.u32 256, 8
    %536 = vbcast.lane.b32.xlu0 %v530, %s535
    %v537 = vpop.permute.xlu0 %536
    %v538 = vlaneseq
    %v539 = vshrl.u32 %v538, 7
    %v540 = vsub.s32 1, %v539
    %v541 = vrot.slane %v309, %v540
    %543 = vbcast.lane.b32.xlu0 %v541, 256
    %v544 = vpop.permute.xlu0 %543
    %s546 = sor.u32 256, 8
    %547 = vbcast.lane.b32.xlu0 %v541, %s546
    %v548 = vpop.permute.xlu0 %547
    %v549 = vlaneseq
    %v550 = vshrl.u32 %v549, 7
    %v551 = vsub.s32 2, %v550
    %v552 = vrot.slane %v309, %v551
    %554 = vbcast.lane.b32.xlu0 %v552, 256
    %v555 = vpop.permute.xlu0 %554
    %s557 = sor.u32 256, 8
    %558 = vbcast.lane.b32.xlu0 %v552, %s557
    %v559 = vpop.permute.xlu0 %558
    %v560 = vlaneseq
    %v561 = vshrl.u32 %v560, 7
    %v562 = vsub.s32 3, %v561
    %v563 = vrot.slane %v309, %v562
    %565 = vbcast.lane.b32.xlu0 %v563, 256
    %v566 = vpop.permute.xlu0 %565
    %s568 = sor.u32 256, 8
    %569 = vbcast.lane.b32.xlu0 %v563, %s568
    %v570 = vpop.permute.xlu0 %569
    %v571 = vlaneseq
    %v572 = vshrl.u32 %v571, 7
    %v573 = vsub.s32 4, %v572
    %v574 = vrot.slane %v309, %v573
    %576 = vbcast.lane.b32.xlu0 %v574, 256
    %v577 = vpop.permute.xlu0 %576
    %s579 = sor.u32 256, 8
    %580 = vbcast.lane.b32.xlu0 %v574, %s579
    %v581 = vpop.permute.xlu0 %580
    %v582 = vlaneseq
    %v583 = vshrl.u32 %v582, 7
    %v584 = vsub.s32 5, %v583
    %v585 = vrot.slane %v309, %v584
    %587 = vbcast.lane.b32.xlu0 %v585, 256
    %v588 = vpop.permute.xlu0 %587
    %s590 = sor.u32 256, 8
    %591 = vbcast.lane.b32.xlu0 %v585, %s590
    %v592 = vpop.permute.xlu0 %591
    %v593 = vlaneseq
    %v594 = vshrl.u32 %v593, 7
    %v595 = vsub.s32 6, %v594
    %v596 = vrot.slane %v309, %v595
    %598 = vbcast.lane.b32.xlu0 %v596, 256
    %v599 = vpop.permute.xlu0 %598
    %s601 = sor.u32 256, 8
    %602 = vbcast.lane.b32.xlu0 %v596, %s601
    %v603 = vpop.permute.xlu0 %602
    %v604 = vlaneseq
    %v605 = vshrl.u32 %v604, 7
    %v606 = vsub.s32 7, %v605
    %v607 = vrot.slane %v309, %v606
    %609 = vbcast.lane.b32.xlu0 %v607, 256
    %v610 = vpop.permute.xlu0 %609
    %s612 = sor.u32 256, 8
    %613 = vbcast.lane.b32.xlu0 %v607, %s612
    %v614 = vpop.permute.xlu0 %613
    %v615 = vlaneseq
    %v616 = vshrl.u32 %v615, 7
    %v617 = vsub.s32 0, %v616
    %v618 = vrot.slane %v501, %v617
    %v619 = vlaneseq
    %v620 = vshrl.u32 %v619, 7
    %v621 = vsub.s32 0, %v620
    %v622 = vrot.slane %v515, %v621
    %v623 = vlaneseq
    %v624 = vshrl.u32 %v623, 7
    %v625 = vsub.s32 0, %v624
    %v626 = vrot.slane %v523, %v625
    %v627 = vlaneseq
    %v628 = vshrl.u32 %v627, 7
    %v629 = vsub.s32 0, %v628
    %v630 = vrot.slane %v525, %v629
    %v631 = vlaneseq
    %v632 = vshrl.u32 %v631, 7
    %v633 = vsub.s32 0, %v632
    %v634 = vrot.slane %v508, %v633
    %v635 = vlaneseq
    %v636 = vshrl.u32 %v635, 7
    %v637 = vsub.s32 0, %v636
    %v638 = vrot.slane %v522, %v637
    %v639 = vlaneseq
    %v640 = vshrl.u32 %v639, 7
    %v641 = vsub.s32 0, %v640
    %v642 = vrot.slane %v524, %v641
    %v643 = vlaneseq
    %v644 = vshrl.u32 %v643, 7
    %v645 = vsub.s32 0, %v644
    %v646 = vrot.slane %v526, %v645
    %v655 = vmul.f32 %v618, %v533
    %v656 = vmul.f32 %v618, %v537
    %v657 = vmul.f32 %v622, %v544
    %v658 = vmul.f32 %v622, %v548
    %v659 = vmul.f32 %v626, %v555
    %v660 = vmul.f32 %v626, %v559
    %v661 = vmul.f32 %v630, %v566
    %v662 = vmul.f32 %v630, %v570
    %v663 = vmul.f32 %v634, %v577
    %v664 = vmul.f32 %v634, %v581
    %v665 = vmul.f32 %v638, %v588
    %v666 = vmul.f32 %v638, %v592
    %v667 = vmul.f32 %v642, %v599
    %v668 = vmul.f32 %v642, %v603
    %v669 = vmul.f32 %v646, %v610
    %v670 = vmul.f32 %v646, %v614
    %s672 = sor.u32 256, 16
    %673 = vbcast.lane.b32.xlu0 %v530, %s672
    %v674 = vpop.permute.xlu0 %673
    %s676 = sor.u32 256, 24
    %677 = vbcast.lane.b32.xlu0 %v530, %s676
    %v678 = vpop.permute.xlu0 %677
    %s680 = sor.u32 256, 16
    %681 = vbcast.lane.b32.xlu0 %v541, %s680
    %v682 = vpop.permute.xlu0 %681
    %s684 = sor.u32 256, 24
    %685 = vbcast.lane.b32.xlu0 %v541, %s684
    %v686 = vpop.permute.xlu0 %685
    %s688 = sor.u32 256, 16
    %689 = vbcast.lane.b32.xlu0 %v552, %s688
    %v690 = vpop.permute.xlu0 %689
    %s692 = sor.u32 256, 24
    %693 = vbcast.lane.b32.xlu0 %v552, %s692
    %v694 = vpop.permute.xlu0 %693
    %s696 = sor.u32 256, 16
    %697 = vbcast.lane.b32.xlu0 %v563, %s696
    %v698 = vpop.permute.xlu0 %697
    %s700 = sor.u32 256, 24
    %701 = vbcast.lane.b32.xlu0 %v563, %s700
    %v702 = vpop.permute.xlu0 %701
    %s704 = sor.u32 256, 16
    %705 = vbcast.lane.b32.xlu0 %v574, %s704
    %v706 = vpop.permute.xlu0 %705
    %s708 = sor.u32 256, 24
    %709 = vbcast.lane.b32.xlu0 %v574, %s708
    %v710 = vpop.permute.xlu0 %709
    %s712 = sor.u32 256, 16
    %713 = vbcast.lane.b32.xlu0 %v585, %s712
    %v714 = vpop.permute.xlu0 %713
    %s716 = sor.u32 256, 24
    %717 = vbcast.lane.b32.xlu0 %v585, %s716
    %v718 = vpop.permute.xlu0 %717
    %s720 = sor.u32 256, 16
    %721 = vbcast.lane.b32.xlu0 %v596, %s720
    %v722 = vpop.permute.xlu0 %721
    %s724 = sor.u32 256, 24
    %725 = vbcast.lane.b32.xlu0 %v596, %s724
    %v726 = vpop.permute.xlu0 %725
    %s728 = sor.u32 256, 16
    %729 = vbcast.lane.b32.xlu0 %v607, %s728
    %v730 = vpop.permute.xlu0 %729
    %s732 = sor.u32 256, 24
    %733 = vbcast.lane.b32.xlu0 %v607, %s732
    %v734 = vpop.permute.xlu0 %733
    %v735 = vmul.f32 %v445, 0.0
    %v736 = vmul.f32 %v447, 0.0
    %v737 = vadd.f32 %v735, %v655
    %v738 = vadd.f32 %v736, %v656
    %v739 = vmul.f32 %v737, %v674
    %v740 = vmul.f32 %v738, %v678
    %v741 = vadd.f32 %v739, %v740
    %v742 = vrot.slane %v741, 4
    %v743 = vadd.f32 %v741, %v742
    %v744 = vrot.slane %v743, 2
    %v745 = vadd.f32 %v743, %v744
    %v746 = vrot.slane %v745, 1
    %v747 = vadd.f32 %v745, %v746
    %v748 = vmul.f32 %v449, %v737
    %v749 = vmul.f32 %v451, %v738
    %v750 = vadd.f32 %v748, %v657
    %v751 = vadd.f32 %v749, %v658
    %v752 = vmul.f32 %v750, %v682
    %v753 = vmul.f32 %v751, %v686
    %v754 = vadd.f32 %v752, %v753
    %v755 = vrot.slane %v754, 4
    %v756 = vadd.f32 %v754, %v755
    %v757 = vrot.slane %v756, 2
    %v758 = vadd.f32 %v756, %v757
    %v759 = vrot.slane %v758, 1
    %v760 = vadd.f32 %v758, %v759
    %v761 = vmul.f32 %v453, %v750
    %v762 = vmul.f32 %v455, %v751
    %v763 = vadd.f32 %v761, %v659
    %v764 = vadd.f32 %v762, %v660
    %v765 = vmul.f32 %v763, %v690
    %v766 = vmul.f32 %v764, %v694
    %v767 = vadd.f32 %v765, %v766
    %v768 = vrot.slane %v767, 4
    %v769 = vadd.f32 %v767, %v768
    %v770 = vrot.slane %v769, 2
    %v771 = vadd.f32 %v769, %v770
    %v772 = vrot.slane %v771, 1
    %v773 = vadd.f32 %v771, %v772
    %v774 = vmul.f32 %v457, %v763
    %v775 = vmul.f32 %v459, %v764
    %v776 = vadd.f32 %v774, %v661
    %v777 = vadd.f32 %v775, %v662
    %v778 = vmul.f32 %v776, %v698
    %v779 = vmul.f32 %v777, %v702
    %v780 = vadd.f32 %v778, %v779
    %v781 = vrot.slane %v780, 4
    %v782 = vadd.f32 %v780, %v781
    %v783 = vrot.slane %v782, 2
    %v784 = vadd.f32 %v782, %v783
    %v785 = vrot.slane %v784, 1
    %v786 = vadd.f32 %v784, %v785
    %v787 = vmul.f32 %v461, %v776
    %v788 = vmul.f32 %v463, %v777
    %v789 = vadd.f32 %v787, %v663
    %v790 = vadd.f32 %v788, %v664
    %v791 = vmul.f32 %v789, %v706
    %v792 = vmul.f32 %v790, %v710
    %v793 = vadd.f32 %v791, %v792
    %v794 = vrot.slane %v793, 4
    %v795 = vadd.f32 %v793, %v794
    %v796 = vrot.slane %v795, 2
    %v797 = vadd.f32 %v795, %v796
    %v798 = vrot.slane %v797, 1
    %v799 = vadd.f32 %v797, %v798
    %v800 = vmul.f32 %v465, %v789
    %v801 = vmul.f32 %v467, %v790
    %v802 = vadd.f32 %v800, %v665
    %v803 = vadd.f32 %v801, %v666
    %v804 = vmul.f32 %v802, %v714
    %v805 = vmul.f32 %v803, %v718
    %v806 = vadd.f32 %v804, %v805
    %v807 = vrot.slane %v806, 4
    %v808 = vadd.f32 %v806, %v807
    %v809 = vrot.slane %v808, 2
    %v810 = vadd.f32 %v808, %v809
    %v811 = vrot.slane %v810, 1
    %v812 = vadd.f32 %v810, %v811
    %v813 = vmul.f32 %v469, %v802
    %v814 = vmul.f32 %v471, %v803
    %v815 = vadd.f32 %v813, %v667
    %v816 = vadd.f32 %v814, %v668
    %v817 = vmul.f32 %v815, %v722
    %v818 = vmul.f32 %v816, %v726
    %v819 = vadd.f32 %v817, %v818
    %v820 = vrot.slane %v819, 4
    %v821 = vadd.f32 %v819, %v820
    %v822 = vrot.slane %v821, 2
    %v823 = vadd.f32 %v821, %v822
    %v824 = vrot.slane %v823, 1
    %v825 = vadd.f32 %v823, %v824
    %v826 = vmul.f32 %v473, %v815
    %v827 = vmul.f32 %v475, %v816
    %v828 = vadd.f32 %v826, %v669
    %v829 = vadd.f32 %v827, %v670
    %v830 = vmul.f32 %v828, %v730
    %v831 = vmul.f32 %v829, %v734
    %v832 = vadd.f32 %v830, %v831
    %v833 = vrot.slane %v832, 4
    %v834 = vadd.f32 %v832, %v833
    %v835 = vrot.slane %v834, 2
    %v836 = vadd.f32 %v834, %v835
    %v837 = vrot.slane %v836, 1
    %v838 = vadd.f32 %v836, %v837
    %vm839 = vcmask 1040384
    %v840 = vsel %vm839, %v747, %v760
    %vm841 = vcmask 1041408
    %v842 = vsel %vm841, %v840, %v773
    %vm843 = vcmask 1042432
    %v844 = vsel %vm843, %v842, %v786
    %vm845 = vcmask 1043456
    %v846 = vsel %vm845, %v844, %v799
    %vm847 = vcmask 1044480
    %v848 = vsel %vm847, %v846, %v812
    %vm849 = vcmask 1045504
    %v850 = vsel %vm849, %v848, %v825
    %vm851 = vcmask 1046528
    %v852 = vsel %vm851, %v850, %v838
    %v853 = vld [vmem:[%s8] sm:$0x1]
    %v855 = vlaneseq
    %v856 = vshrl.u32 %v855, 7
    %v857 = vsub.s32 0, %v856
    %v858 = vrot.slane %v853, %v857
    %v860 = vmul.f32 %v174, %v858
    %v861 = vadd.f32 %v852, %v860
    %v862 = vxor.u32 %v121, 2147483648
    %v863 = vmul.f32 %v862, 1.442695
    %v864 = vpow.pop %v863
    %v865 = vadd.f32 %v864, 1.0
    %v866 = vrcp.pop %v865
    %v867 = vmul.f32 1.0, %v866
    %v868 = vmul.f32 %v121, %v867
    %v869 = vmul.f32 %v861, %v868
    %v870 = vpack.c.bf16 %v869, %v869
    %v871 = vld [vmem:[%s9] sm:$0xf]
    %v872 = vld [vmem:[%s9 + $0x4] sm:$0xf]
    %v873 = vld [vmem:[%s9 + $0x8] sm:$0xf]
    %v874 = vld [vmem:[%s9 + $0xc] sm:$0xf]
    %v875 = vld [vmem:[%s9 + $0x10] sm:$0xf]
    %v876 = vld [vmem:[%s9 + $0x14] sm:$0xf]
    %v877 = vld [vmem:[%s9 + $0x18] sm:$0xf]
    %v878 = vld [vmem:[%s9 + $0x1c] sm:$0xf]
    %v879 = vld [vmem:[%s9 + $0x20] sm:$0xf]
    %v880 = vld [vmem:[%s9 + $0x24] sm:$0xf]
    %v881 = vld [vmem:[%s9 + $0x28] sm:$0xf]
    %v882 = vld [vmem:[%s9 + $0x2c] sm:$0xf]
    %v883 = vld [vmem:[%s9 + $0x30] sm:$0xf]
    %v884 = vld [vmem:[%s9 + $0x34] sm:$0xf]
    %v885 = vld [vmem:[%s9 + $0x38] sm:$0xf]
    %v886 = vld [vmem:[%s9 + $0x3c] sm:$0xf]
    %v903 = vunpack.c.l.b16 %v871
    %v904 = vunpack.c.l.b16 %v872
    %v905 = vunpack.c.l.b16 %v873
    %v906 = vunpack.c.l.b16 %v874
    %v907 = vunpack.c.l.b16 %v875
    %v908 = vunpack.c.l.b16 %v876
    %v909 = vunpack.c.l.b16 %v877
    %v910 = vunpack.c.l.b16 %v878
    %v911 = vunpack.c.l.b16 %v879
    %v912 = vunpack.c.l.b16 %v880
    %v913 = vunpack.c.l.b16 %v881
    %v914 = vunpack.c.l.b16 %v882
    %v915 = vunpack.c.l.b16 %v883
    %v916 = vunpack.c.l.b16 %v884
    %v917 = vunpack.c.l.b16 %v885
    %v918 = vunpack.c.l.b16 %v886
    %v919 = vpack.c.b16 %v904, %v903
    %v920 = vpack.c.b16 %v906, %v905
    %v921 = vpack.c.b16 %v908, %v907
    %v922 = vpack.c.b16 %v910, %v909
    %v923 = vpack.c.b16 %v912, %v911
    %v924 = vpack.c.b16 %v914, %v913
    %v925 = vpack.c.b16 %v916, %v915
    %v926 = vpack.c.b16 %v918, %v917
    %935 = vmatprep.subr.bf16.mxu0 0
    %936 = vmatpush1.bf16.msra.mxu0 %v919
    %937 = vmatprep.subr.bf16.mxu0 0
    %938 = vmatpush1.bf16.msra.mxu0 %v920
    %939 = vmatprep.subr.bf16.mxu0 0
    %940 = vmatpush1.bf16.msra.mxu0 %v921
    %941 = vmatprep.subr.bf16.mxu0 0
    %942 = vmatpush1.bf16.msra.mxu0 %v922
    %943 = vmatprep.subr.bf16.mxu0 0
    %944 = vmatpush1.bf16.msra.mxu0 %v923
    %945 = vmatprep.subr.bf16.mxu0 0
    %946 = vmatpush1.bf16.msra.mxu0 %v924
    %947 = vmatprep.subr.bf16.mxu0 0
    %948 = vmatpush1.bf16.msra.mxu0 %v925
    %949 = vmatprep.subr.bf16.mxu0 0
    %950 = vmatpush1.bf16.msra.mxu0 %v926
    %951 = vmatprep.subr.bf16.mxu0 0
    %952 = vmatpush1.bf16.msra.mxu0 0
    %953 = vmatprep.subr.bf16.mxu0 0
    %954 = vmatpush1.bf16.msra.mxu0 0
    %955 = vmatprep.subr.bf16.mxu0 0
    %956 = vmatpush1.bf16.msra.mxu0 0
    %957 = vmatprep.subr.bf16.mxu0 0
    %958 = vmatpush1.bf16.msra.mxu0 0
    %959 = vmatprep.subr.bf16.mxu0 0
    %960 = vmatpush1.bf16.msra.mxu0 0
    %961 = vmatprep.subr.bf16.mxu0 0
    %962 = vmatpush1.bf16.msra.mxu0 0
    %963 = vmatprep.subr.bf16.mxu0 0
    %964 = vmatpush1.bf16.msra.mxu0 0
    %965 = vmatprep.subr.bf16.mxu0 0
    %966 = vmatpush1.bf16.msra.mxu0 0
    %967 = vmatprep.mubr.bf16.mxu0 0
    %968 = vmatmul.mubr.bf16.gmra.mrb[0].mxu0 %v870
    %v969 = vpop.f32.mrb[0].mxu0
    %v970 = vadd.f32 0.0, %v969
    %v971 = vpop.f32.mrb[0].mxu0
    %v972 = vpop.f32.mrb[0].mxu0
    %v973 = vpop.f32.mrb[0].mxu0
    %974 = vdwg.mxu0
    %v975 = vadd.f32 %v37, %v970
    %976 = vst.msk [vmem:[#allocation2] sm:$0xff] %vm39, %v975
    // Predicated region
    $region42: #{tpu_custom_call.1} parent=1 // pred_check
      _
    $region43: #{tpu_custom_call.1} parent=1 // pred_check_branch
      %978 = sbr.rel (0) target = $region45
    $region44: #{tpu_custom_call.1} parent=1 // pred_region
      %s980 = ssub.s32 128, 128
      %981 = vsyncadd [#allocation3], %s980
      %s983 = sshll.u32 [#allocation2], 4
      %s984 = int_to_ptr.vmem [resolvable:$true] %s983
      %986 = dma.vmem_to_hbm [thread:$0]  %s984, 128, %s10, [#allocation3]
    $region45: #{tpu_custom_call.1} parent=1 // pred_fallthru
      _
    // Predicated region
    $region46: #{tpu_custom_call.1} parent=1 // pred_check
      _
    $region47: #{tpu_custom_call.1} parent=1 // pred_check_branch
      %988 = sbr.rel (0) target = $region49
    $region48: #{tpu_custom_call.1} parent=1 // pred_region
      %989 = dma.done [#allocation3], 128
    $region49: #{tpu_custom_call.1} parent=1 // pred_fallthru
      _
    %990 = vsyncpa [#allocation3], 1

</llo_original>
